<compile_context>
chip_gen: v6e
topology: v6e:2x2x1
jax: 0.10.0
libtpu: 0.0.40
codegen_flags: <defaults>
</compile_context>

<pallas_src>
import functools

import jax
import jax.numpy as jnp
from jax.experimental import pallas as pl
from jax.experimental.pallas import tpu as pltpu

HIDDEN_DIMS = [512, 256, 128, 128, 64, 16]


def _mlp_kernel(x_ref, *refs, n_hidden):
    """Fused critic MLP.

    refs = (w0, b0, w1, b1, ..., w_{n_hidden-1}, b_{n_hidden-1},
            w_last_row, b_last, o_ref)
    x_ref:        bf16 (TB, d_in)
    hidden w:     bf16 (in, out);  biases: f32 (1, out)
    w_last_row:   bf16 (1, last_hidden);  b_last: f32 (1, 1)
    o_ref:        f32 (1, TB)   (lane-dense: batch on the lane axis)
    """
    o_ref = refs[-1]
    p = refs[:-1]

    h = x_ref[...]                                   # bf16 (TB, d_in)
    for layer in range(n_hidden):
        w = p[2 * layer][...]                        # bf16 (in, out), VMEM-resident
        b = p[2 * layer + 1][...]                    # f32 (1, out)
        y = jnp.dot(h, w, preferred_element_type=jnp.float32)
        # Fused bias + ReLU; materialize only the bf16 copy of the activation.
        h = jnp.maximum(y + b, 0.0).astype(jnp.bfloat16)

    w_last = p[2 * n_hidden][...]                    # bf16 (1, last_hidden)
    b_last = p[2 * n_hidden + 1][...]                # f32 (1, 1)
    # Final (last_hidden -> 1) layer emitted lane-dense as a (1, TB) row:
    # w_last @ h^T  (standard A @ B^T contraction, f32 accumulation).
    o_row = jax.lax.dot_general(
        w_last, h,
        dimension_numbers=(((1,), (1,)), ((), ())),
        preferred_element_type=jnp.float32)          # (1, TB)
    o_ref[...] = (o_row + b_last).astype(o_ref.dtype)


def init_critic_params(key, input_dim, hidden_dims=HIDDEN_DIMS):
    """PyTorch-style uniform(+/- 1/sqrt(fan_in)) init, weights stored (in, out)."""
    dims = [input_dim] + list(hidden_dims) + [1]
    params = []
    for i in range(len(dims) - 1):
        d_in, d_out = dims[i], dims[i + 1]
        key, kw, kb = jax.random.split(key, 3)
        bound = 1.0 / float(d_in) ** 0.5
        w = jax.random.uniform(kw, (d_in, d_out), jnp.float32, -bound, bound)
        b = jax.random.uniform(kb, (1, d_out), jnp.float32, -bound, bound)
        params.append((w, b))
    return params


def prepare_kernel_params(params):
    """Hidden weights -> bf16 (in, out); biases -> f32 (1, out);
    final weight -> bf16 row (1, last_hidden); final bias -> f32 (1, 1)."""
    flat = []
    n = len(params)
    for i, (w, b) in enumerate(params):
        if i < n - 1:
            flat.append(w.astype(jnp.bfloat16))
            flat.append(b.astype(jnp.float32))
        else:
            flat.append(jnp.transpose(w).astype(jnp.bfloat16))  # (1, last_hidden)
            flat.append(b.astype(jnp.float32))                  # (1, 1)
    return tuple(flat)


def _choose_batch_tile(b):
    # Small batch: one full-size tile (block == full dim is always legal).
    if b <= 256:
        return b
    # Large batch: tile is a multiple of 128, capped at 1024, and sized so the
    # grid has >= 2 tiles (v7x megacore sharding of the "parallel" batch axis).
    half = -(-b // 2)                       # cdiv(b, 2)
    tb = ((half + 127) // 128) * 128        # round up to multiple of 128
    return min(1024, tb)


@jax.jit
def critic_forward(external, internal, params_flat):
    b = external.shape[0]
    # Fuse flatten + torch.cat into a single (B, d_in) bf16 operand so layer 0
    # is one K=d_in matmul and input HBM traffic is halved.
    x = jnp.concatenate(
        [external.reshape(b, -1), internal.reshape(b, -1)], axis=1
    ).astype(jnp.bfloat16)
    d_in = x.shape[1]

    n_hidden = len(params_flat) // 2 - 1
    tb = _choose_batch_tile(b)
    num_tiles = pl.cdiv(b, tb)
    b_pad = num_tiles * tb

    in_specs = [pl.BlockSpec((tb, d_in), lambda i: (i, 0))]
    # Parameters: full-array blocks with constant index maps -> fetched once,
    # held resident in VMEM across all batch tiles (~0.5 MiB total).
    for prm in params_flat:
        in_specs.append(pl.BlockSpec(prm.shape, lambda i: (0, 0)))

    # Lane-dense output: (1, b_pad) with batch on the lane axis; padded tail
    # columns (if b % tb != 0) are sliced off below.
    out_spec = pl.BlockSpec((1, tb), lambda i: (0, i))
    out_shape = jax.ShapeDtypeStruct((1, b_pad), jnp.float32)

    kernel = functools.partial(_mlp_kernel, n_hidden=n_hidden)

    out_row = pl.pallas_call(
        kernel,
        out_shape=out_shape,
        grid_spec=pltpu.PrefetchScalarGridSpec(
            num_scalar_prefetch=0,
            grid=(num_tiles,),
            in_specs=in_specs,
            out_specs=out_spec,
        ),
        compiler_params=pltpu.CompilerParams(
            dimension_semantics=("parallel",),   # batch tiles independent (megacore)
        ),
    )(x, *params_flat)

    return out_row[0, :b].reshape(b, 1)


if __name__ == "__main__":
    # Shapes consistent with the module's constructor:
    #   external_max_length=8, ext_input_dim=4, internal_max_length=8, int_input_dim=4
    #   => input_dim = 4*8 + 4*8 = 64
    batch = 2
    external_max_length, ext_input_dim = 8, 4
    internal_max_length, int_input_dim = 8, 4
    input_dim = ext_input_dim * external_max_length + int_input_dim * internal_max_length

    key = jax.random.PRNGKey(0)
    k_ext, k_int, k_params = jax.random.split(key, 3)

    external = jax.random.normal(
        k_ext, (batch, external_max_length, ext_input_dim), jnp.float32
    )
    internal = jax.random.normal(
        k_int, (batch, internal_max_length, int_input_dim), jnp.float32
    )

    params = init_critic_params(k_params, input_dim)
    kernel_params = prepare_kernel_params(params)

    out = critic_forward(external, internal, kernel_params)
    out = jax.block_until_ready(out)
    assert out.shape == (batch, 1)

    # Reference in plain JAX with matching bf16 weight/activation staging and
    # f32 accumulation (tolerance relaxed vs pure-f32 due to bf16 storage).
    x_ref = jnp.concatenate(
        [external.reshape(batch, -1), internal.reshape(batch, -1)], axis=1
    )
    h = x_ref.astype(jnp.bfloat16)
    for i, (w, bvec) in enumerate(params):
        if i < len(params) - 1:
            h = jnp.maximum(
                jnp.dot(h, w.astype(jnp.bfloat16),
                        preferred_element_type=jnp.float32) + bvec,
                0.0,
            ).astype(jnp.bfloat16)
        else:
            ref = jnp.dot(h, w.astype(jnp.bfloat16),
                          preferred_element_type=jnp.float32) + bvec
    assert jnp.allclose(out, ref, atol=1e-2, rtol=1e-2)

    print("KERNEL_OK")
</pallas_src>

<mosaic_0001>
module attributes {stable_mosaic.version = 11 : i64} {
  func.func @_mlp_kernel(%arg0: i32, %arg1: memref<2x64xbf16, #tpu.memory_space<vmem>>, %arg2: memref<64x512xbf16, #tpu.memory_space<vmem>>, %arg3: memref<1x512xf32, #tpu.memory_space<vmem>>, %arg4: memref<512x256xbf16, #tpu.memory_space<vmem>>, %arg5: memref<1x256xf32, #tpu.memory_space<vmem>>, %arg6: memref<256x128xbf16, #tpu.memory_space<vmem>>, %arg7: memref<1x128xf32, #tpu.memory_space<vmem>>, %arg8: memref<128x128xbf16, #tpu.memory_space<vmem>>, %arg9: memref<1x128xf32, #tpu.memory_space<vmem>>, %arg10: memref<128x64xbf16, #tpu.memory_space<vmem>>, %arg11: memref<1x64xf32, #tpu.memory_space<vmem>>, %arg12: memref<64x16xbf16, #tpu.memory_space<vmem>>, %arg13: memref<1x16xf32, #tpu.memory_space<vmem>>, %arg14: memref<1x16xbf16, #tpu.memory_space<vmem>>, %arg15: memref<1x1xf32, #tpu.memory_space<vmem>>, %arg16: memref<1x2xf32, #tpu.memory_space<vmem>>) attributes {dimension_semantics = [#tpu.dimension_semantics<parallel>], iteration_bounds = array<i64: 1>, scalar_prefetch = 0 : i64, scratch_operands = 0 : i64, tpu.core_type = #tpu.core_type<tc>, window_params = [{transform_indices = @transform_0, window_bounds = array<i64: 2, 64>}, {pipeline_mode = #tpu.pipeline_mode<synchronous>, transform_indices = @transform_1, window_bounds = array<i64: 64, 512>}, {pipeline_mode = #tpu.pipeline_mode<synchronous>, transform_indices = @transform_2, window_bounds = array<i64: 1, 512>}, {pipeline_mode = #tpu.pipeline_mode<synchronous>, transform_indices = @transform_3, window_bounds = array<i64: 512, 256>}, {pipeline_mode = #tpu.pipeline_mode<synchronous>, transform_indices = @transform_4, window_bounds = array<i64: 1, 256>}, {pipeline_mode = #tpu.pipeline_mode<synchronous>, transform_indices = @transform_5, window_bounds = array<i64: 256, 128>}, {pipeline_mode = #tpu.pipeline_mode<synchronous>, transform_indices = @transform_6, window_bounds = array<i64: 1, 128>}, {pipeline_mode = #tpu.pipeline_mode<synchronous>, transform_indices = @transform_7, window_bounds = array<i64: 128, 128>}, {pipeline_mode = #tpu.pipeline_mode<synchronous>, transform_indices = @transform_8, window_bounds = array<i64: 1, 128>}, {pipeline_mode = #tpu.pipeline_mode<synchronous>, transform_indices = @transform_9, window_bounds = array<i64: 128, 64>}, {pipeline_mode = #tpu.pipeline_mode<synchronous>, transform_indices = @transform_10, window_bounds = array<i64: 1, 64>}, {pipeline_mode = #tpu.pipeline_mode<synchronous>, transform_indices = @transform_11, window_bounds = array<i64: 64, 16>}, {pipeline_mode = #tpu.pipeline_mode<synchronous>, transform_indices = @transform_12, window_bounds = array<i64: 1, 16>}, {pipeline_mode = #tpu.pipeline_mode<synchronous>, transform_indices = @transform_13, window_bounds = array<i64: 1, 16>}, {pipeline_mode = #tpu.pipeline_mode<synchronous>, transform_indices = @transform_14, window_bounds = array<i64: 1, 1>}, {transform_indices = @transform_15, window_bounds = array<i64: 1, 2>}]} {
    %c0 = arith.constant 0 : index
    %c0_0 = arith.constant 0 : index
    %0 = vector.load %arg1[%c0, %c0_0] : memref<2x64xbf16, #tpu.memory_space<vmem>>, vector<2x64xbf16>
    %c0_1 = arith.constant 0 : index
    %c0_2 = arith.constant 0 : index
    %1 = vector.load %arg2[%c0_1, %c0_2] : memref<64x512xbf16, #tpu.memory_space<vmem>>, vector<64x512xbf16>
    %c0_3 = arith.constant 0 : index
    %c0_4 = arith.constant 0 : index
    %2 = vector.load %arg3[%c0_3, %c0_4] : memref<1x512xf32, #tpu.memory_space<vmem>>, vector<1x512xf32>
    %cst = arith.constant dense<0.000000e+00> : vector<2x512xf32>
    %3 = tpu.matmul %0, %1, %cst {dimension_numbers = #tpu.dot_dimension_numbers<[1], [0], [0], [1], [0, 0, 1, 1], [], []>} : vector<2x64xbf16>, vector<64x512xbf16>, vector<2x512xf32> -> vector<2x512xf32>
    %4 = vector.broadcast %2 : vector<1x512xf32> to vector<2x512xf32>
    %5 = arith.addf %3, %4 : vector<2x512xf32>
    %cst_5 = arith.constant 0.000000e+00 : f32
    %6 = vector.broadcast %cst_5 : f32 to vector<2x512xf32>
    %7 = arith.maximumf %5, %6 : vector<2x512xf32>
    %8 = arith.truncf %7 : vector<2x512xf32> to vector<2x512xbf16>
    %c0_6 = arith.constant 0 : index
    %c0_7 = arith.constant 0 : index
    %9 = vector.load %arg4[%c0_6, %c0_7] : memref<512x256xbf16, #tpu.memory_space<vmem>>, vector<512x256xbf16>
    %c0_8 = arith.constant 0 : index
    %c0_9 = arith.constant 0 : index
    %10 = vector.load %arg5[%c0_8, %c0_9] : memref<1x256xf32, #tpu.memory_space<vmem>>, vector<1x256xf32>
    %cst_10 = arith.constant dense<0.000000e+00> : vector<2x256xf32>
    %11 = tpu.matmul %8, %9, %cst_10 {dimension_numbers = #tpu.dot_dimension_numbers<[1], [0], [0], [1], [0, 0, 1, 1], [], []>} : vector<2x512xbf16>, vector<512x256xbf16>, vector<2x256xf32> -> vector<2x256xf32>
    %12 = vector.broadcast %10 : vector<1x256xf32> to vector<2x256xf32>
    %13 = arith.addf %11, %12 : vector<2x256xf32>
    %cst_11 = arith.constant 0.000000e+00 : f32
    %14 = vector.broadcast %cst_11 : f32 to vector<2x256xf32>
    %15 = arith.maximumf %13, %14 : vector<2x256xf32>
    %16 = arith.truncf %15 : vector<2x256xf32> to vector<2x256xbf16>
    %c0_12 = arith.constant 0 : index
    %c0_13 = arith.constant 0 : index
    %17 = vector.load %arg6[%c0_12, %c0_13] : memref<256x128xbf16, #tpu.memory_space<vmem>>, vector<256x128xbf16>
    %c0_14 = arith.constant 0 : index
    %c0_15 = arith.constant 0 : index
    %18 = vector.load %arg7[%c0_14, %c0_15] : memref<1x128xf32, #tpu.memory_space<vmem>>, vector<1x128xf32>
    %cst_16 = arith.constant dense<0.000000e+00> : vector<2x128xf32>
    %19 = tpu.matmul %16, %17, %cst_16 {dimension_numbers = #tpu.dot_dimension_numbers<[1], [0], [0], [1], [0, 0, 1, 1], [], []>} : vector<2x256xbf16>, vector<256x128xbf16>, vector<2x128xf32> -> vector<2x128xf32>
    %20 = vector.broadcast %18 : vector<1x128xf32> to vector<2x128xf32>
    %21 = arith.addf %19, %20 : vector<2x128xf32>
    %cst_17 = arith.constant 0.000000e+00 : f32
    %22 = vector.broadcast %cst_17 : f32 to vector<2x128xf32>
    %23 = arith.maximumf %21, %22 : vector<2x128xf32>
    %24 = arith.truncf %23 : vector<2x128xf32> to vector<2x128xbf16>
    %c0_18 = arith.constant 0 : index
    %c0_19 = arith.constant 0 : index
    %25 = vector.load %arg8[%c0_18, %c0_19] : memref<128x128xbf16, #tpu.memory_space<vmem>>, vector<128x128xbf16>
    %c0_20 = arith.constant 0 : index
    %c0_21 = arith.constant 0 : index
    %26 = vector.load %arg9[%c0_20, %c0_21] : memref<1x128xf32, #tpu.memory_space<vmem>>, vector<1x128xf32>
    %cst_22 = arith.constant dense<0.000000e+00> : vector<2x128xf32>
    %27 = tpu.matmul %24, %25, %cst_22 {dimension_numbers = #tpu.dot_dimension_numbers<[1], [0], [0], [1], [0, 0, 1, 1], [], []>} : vector<2x128xbf16>, vector<128x128xbf16>, vector<2x128xf32> -> vector<2x128xf32>
    %28 = vector.broadcast %26 : vector<1x128xf32> to vector<2x128xf32>
    %29 = arith.addf %27, %28 : vector<2x128xf32>
    %cst_23 = arith.constant 0.000000e+00 : f32
    %30 = vector.broadcast %cst_23 : f32 to vector<2x128xf32>
    %31 = arith.maximumf %29, %30 : vector<2x128xf32>
    %32 = arith.truncf %31 : vector<2x128xf32> to vector<2x128xbf16>
    %c0_24 = arith.constant 0 : index
    %c0_25 = arith.constant 0 : index
    %33 = vector.load %arg10[%c0_24, %c0_25] : memref<128x64xbf16, #tpu.memory_space<vmem>>, vector<128x64xbf16>
    %c0_26 = arith.constant 0 : index
    %c0_27 = arith.constant 0 : index
    %34 = vector.load %arg11[%c0_26, %c0_27] : memref<1x64xf32, #tpu.memory_space<vmem>>, vector<1x64xf32>
    %cst_28 = arith.constant dense<0.000000e+00> : vector<2x64xf32>
    %35 = tpu.matmul %32, %33, %cst_28 {dimension_numbers = #tpu.dot_dimension_numbers<[1], [0], [0], [1], [0, 0, 1, 1], [], []>} : vector<2x128xbf16>, vector<128x64xbf16>, vector<2x64xf32> -> vector<2x64xf32>
    %36 = vector.broadcast %34 : vector<1x64xf32> to vector<2x64xf32>
    %37 = arith.addf %35, %36 : vector<2x64xf32>
    %cst_29 = arith.constant 0.000000e+00 : f32
    %38 = vector.broadcast %cst_29 : f32 to vector<2x64xf32>
    %39 = arith.maximumf %37, %38 : vector<2x64xf32>
    %40 = arith.truncf %39 : vector<2x64xf32> to vector<2x64xbf16>
    %c0_30 = arith.constant 0 : index
    %c0_31 = arith.constant 0 : index
    %41 = vector.load %arg12[%c0_30, %c0_31] : memref<64x16xbf16, #tpu.memory_space<vmem>>, vector<64x16xbf16>
    %c0_32 = arith.constant 0 : index
    %c0_33 = arith.constant 0 : index
    %42 = vector.load %arg13[%c0_32, %c0_33] : memref<1x16xf32, #tpu.memory_space<vmem>>, vector<1x16xf32>
    %cst_34 = arith.constant dense<0.000000e+00> : vector<2x16xf32>
    %43 = tpu.matmul %40, %41, %cst_34 {dimension_numbers = #tpu.dot_dimension_numbers<[1], [0], [0], [1], [0, 0, 1, 1], [], []>} : vector<2x64xbf16>, vector<64x16xbf16>, vector<2x16xf32> -> vector<2x16xf32>
    %44 = vector.broadcast %42 : vector<1x16xf32> to vector<2x16xf32>
    %45 = arith.addf %43, %44 : vector<2x16xf32>
    %cst_35 = arith.constant 0.000000e+00 : f32
    %46 = vector.broadcast %cst_35 : f32 to vector<2x16xf32>
    %47 = arith.maximumf %45, %46 : vector<2x16xf32>
    %48 = arith.truncf %47 : vector<2x16xf32> to vector<2x16xbf16>
    %c0_36 = arith.constant 0 : index
    %c0_37 = arith.constant 0 : index
    %49 = vector.load %arg14[%c0_36, %c0_37] : memref<1x16xbf16, #tpu.memory_space<vmem>>, vector<1x16xbf16>
    %c0_38 = arith.constant 0 : index
    %c0_39 = arith.constant 0 : index
    %50 = vector.load %arg15[%c0_38, %c0_39] : memref<1x1xf32, #tpu.memory_space<vmem>>, vector<1x1xf32>
    %cst_40 = arith.constant dense<0.000000e+00> : vector<1x2xf32>
    %51 = tpu.matmul %49, %48, %cst_40 {dimension_numbers = #tpu.dot_dimension_numbers<[1], [1], [0], [0], [0, 0, 1, 0], [], []>} : vector<1x16xbf16>, vector<2x16xbf16>, vector<1x2xf32> -> vector<1x2xf32>
    %52 = vector.broadcast %50 : vector<1x1xf32> to vector<1x2xf32>
    %53 = arith.addf %51, %52 : vector<1x2xf32>
    %c0_41 = arith.constant 0 : index
    %c0_42 = arith.constant 0 : index
    %54 = vector.load %arg16[%c0_41, %c0_42] : memref<1x2xf32, #tpu.memory_space<vmem>>, vector<1x2xf32>
    tpu.vector_store %arg16[%c0_41, %c0_42], %53 {strides = array<i32>} : memref<1x2xf32, #tpu.memory_space<vmem>>, vector<1x2xf32>,
    return
  }
  func.func @transform_0(%arg0: i32) -> (i32, i32) {
    %c0_i32 = arith.constant 0 : i32
    %c0_i32_0 = arith.constant 0 : i32
    return %arg0, %c0_i32 : i32, i32
  }
  func.func @transform_1(%arg0: i32) -> (i32, i32) {
    %c0_i32 = arith.constant 0 : i32
    %c0_i32_0 = arith.constant 0 : i32
    %c0_i32_1 = arith.constant 0 : i32
    return %c0_i32, %c0_i32_0 : i32, i32
  }
  func.func @transform_2(%arg0: i32) -> (i32, i32) {
    %c0_i32 = arith.constant 0 : i32
    %c0_i32_0 = arith.constant 0 : i32
    %c0_i32_1 = arith.constant 0 : i32
    return %c0_i32, %c0_i32_0 : i32, i32
  }
  func.func @transform_3(%arg0: i32) -> (i32, i32) {
    %c0_i32 = arith.constant 0 : i32
    %c0_i32_0 = arith.constant 0 : i32
    %c0_i32_1 = arith.constant 0 : i32
    return %c0_i32, %c0_i32_0 : i32, i32
  }
  func.func @transform_4(%arg0: i32) -> (i32, i32) {
    %c0_i32 = arith.constant 0 : i32
    %c0_i32_0 = arith.constant 0 : i32
    %c0_i32_1 = arith.constant 0 : i32
    return %c0_i32, %c0_i32_0 : i32, i32
  }
  func.func @transform_5(%arg0: i32) -> (i32, i32) {
    %c0_i32 = arith.constant 0 : i32
    %c0_i32_0 = arith.constant 0 : i32
    %c0_i32_1 = arith.constant 0 : i32
    return %c0_i32, %c0_i32_0 : i32, i32
  }
  func.func @transform_6(%arg0: i32) -> (i32, i32) {
    %c0_i32 = arith.constant 0 : i32
    %c0_i32_0 = arith.constant 0 : i32
    %c0_i32_1 = arith.constant 0 : i32
    return %c0_i32, %c0_i32_0 : i32, i32
  }
  func.func @transform_7(%arg0: i32) -> (i32, i32) {
    %c0_i32 = arith.constant 0 : i32
    %c0_i32_0 = arith.constant 0 : i32
    %c0_i32_1 = arith.constant 0 : i32
    return %c0_i32, %c0_i32_0 : i32, i32
  }
  func.func @transform_8(%arg0: i32) -> (i32, i32) {
    %c0_i32 = arith.constant 0 : i32
    %c0_i32_0 = arith.constant 0 : i32
    %c0_i32_1 = arith.constant 0 : i32
    return %c0_i32, %c0_i32_0 : i32, i32
  }
  func.func @transform_9(%arg0: i32) -> (i32, i32) {
    %c0_i32 = arith.constant 0 : i32
    %c0_i32_0 = arith.constant 0 : i32
    %c0_i32_1 = arith.constant 0 : i32
    return %c0_i32, %c0_i32_0 : i32, i32
  }
  func.func @transform_10(%arg0: i32) -> (i32, i32) {
    %c0_i32 = arith.constant 0 : i32
    %c0_i32_0 = arith.constant 0 : i32
    %c0_i32_1 = arith.constant 0 : i32
    return %c0_i32, %c0_i32_0 : i32, i32
  }
  func.func @transform_11(%arg0: i32) -> (i32, i32) {
    %c0_i32 = arith.constant 0 : i32
    %c0_i32_0 = arith.constant 0 : i32
    %c0_i32_1 = arith.constant 0 : i32
    return %c0_i32, %c0_i32_0 : i32, i32
  }
  func.func @transform_12(%arg0: i32) -> (i32, i32) {
    %c0_i32 = arith.constant 0 : i32
    %c0_i32_0 = arith.constant 0 : i32
    %c0_i32_1 = arith.constant 0 : i32
    return %c0_i32, %c0_i32_0 : i32, i32
  }
  func.func @transform_13(%arg0: i32) -> (i32, i32) {
    %c0_i32 = arith.constant 0 : i32
    %c0_i32_0 = arith.constant 0 : i32
    %c0_i32_1 = arith.constant 0 : i32
    return %c0_i32, %c0_i32_0 : i32, i32
  }
  func.func @transform_14(%arg0: i32) -> (i32, i32) {
    %c0_i32 = arith.constant 0 : i32
    %c0_i32_0 = arith.constant 0 : i32
    %c0_i32_1 = arith.constant 0 : i32
    return %c0_i32, %c0_i32_0 : i32, i32
  }
  func.func @transform_15(%arg0: i32) -> (i32, i32) {
    %c0_i32 = arith.constant 0 : i32
    %c0_i32_0 = arith.constant 0 : i32
    return %c0_i32, %arg0 : i32, i32
  }
}

</mosaic_0001>

<llo_original>
// kernel: critic_forward.1
$region0: #{critic_forward.1}
  #allocation0 [shape = 'u32[]', space=smem, size = 0x4, offset = 0x4, fixed_abs, tag = 'smem constant byte address 0x4 - core index']
  #allocation1 [shape = 'u32[144,128]{1,0:T(1,128)}', space=vmem, size = 0x12000, scoped, tag = 'internal scratch']
  #allocation2 [shape = 'f32[1,1]{1,0:T(1,128)S(1)}', space=vmem, size = 0x200, scoped, tag = 'scoped memory for critic_forward.1']
  %s0 = inlined_call_operand.vmem [shape: bf16[2,64], index: 0, kind: input, shape index: {}]
  %s1 = inlined_call_operand.vmem [shape: bf16[64,512], index: 1, kind: input, shape index: {}]
  %s2 = inlined_call_operand.hbm [shape: f32[1,512], index: 2, kind: input, shape index: {}]
  %s3 = inlined_call_operand.hbm [shape: bf16[512,256], index: 3, kind: input, shape index: {}]
  %s4 = inlined_call_operand.hbm [shape: f32[1,256], index: 4, kind: input, shape index: {}]
  %s5 = inlined_call_operand.hbm [shape: bf16[256,128], index: 5, kind: input, shape index: {}]
  %s6 = inlined_call_operand.vmem [shape: f32[1,128], index: 6, kind: input, shape index: {}]
  %s7 = inlined_call_operand.vmem [shape: bf16[128,128], index: 7, kind: input, shape index: {}]
  %s8 = inlined_call_operand.hbm [shape: f32[1,128], index: 8, kind: input, shape index: {}]
  %s9 = inlined_call_operand.vmem [shape: bf16[128,64], index: 9, kind: input, shape index: {}]
  %s10 = inlined_call_operand.vmem [shape: f32[1,64], index: 10, kind: input, shape index: {}]
  %s11 = inlined_call_operand.vmem [shape: bf16[64,16], index: 11, kind: input, shape index: {}]
  %s12 = inlined_call_operand.vmem [shape: f32[1,16], index: 12, kind: input, shape index: {}]
  %s13 = inlined_call_operand.vmem [shape: bf16[1,16], index: 13, kind: input, shape index: {}]
  %s14 = inlined_call_operand.<no memory space> [shape: f32[1,1], index: 14, kind: input, shape index: {}]
  %s15 = inlined_call_operand.hbm [shape: f32[1,2], index: 15, kind: output, shape index: {}]
  %s16 = sld [smem:[#allocation0]]
  $region90: #{critic_forward.1} parent=0
    _
  %s18 = ssub.s32 1, %s16
  %s19 = scalar_select 0, %s18, %s16
  %v20 = vstv %s14
  %21 = vst [vmem:[#allocation2] sm:$0x1] %v20
  $region1: #{critic_forward.1} parent=0
    #allocation3 [shape = 'u8[2048]{0}', space=vmem, size = 0x800, scoped, tag = 'input window, operand 2, single buffered']
    #allocation4 [shape = 's32[1]{0}', space=sflag, size = 0x4, scoped, tag = 'scoped memory for critic_forward.1']
    #allocation5 [shape = 's32[1]{0}', space=sflag, size = 0x4, scoped, tag = 'scoped memory for critic_forward.1']
    #allocation6 [shape = 'u8[262144]{0}', space=vmem, size = 0x40000, scoped, tag = 'input window, operand 3, single buffered']
    #allocation7 [shape = 's32[1]{0}', space=sflag, size = 0x4, scoped, tag = 'scoped memory for critic_forward.1']
    #allocation8 [shape = 'u8[1024]{0}', space=vmem, size = 0x400, scoped, tag = 'input window, operand 4, single buffered']
    #allocation9 [shape = 'u8[65536]{0}', space=vmem, size = 0x10000, scoped, tag = 'input window, operand 5, single buffered']
    #allocation10 [shape = 's32[1]{0}', space=sflag, size = 0x4, scoped, tag = 'scoped memory for critic_forward.1']
    #allocation11 [shape = 'u8[512]{0}', space=vmem, size = 0x400, scoped, tag = 'input window, operand 8, single buffered']
    #allocation12 [shape = 'u8[512]{0}', space=vmem, size = 0x400, scoped, tag = 'output window, operand 0, single buffered']
    %22 = vsyncpa [#allocation4], 0
    %23 = vsyncpa [#allocation7], 0
    %24 = vsyncpa [#allocation10], 0
    %25 = vsyncpa [#allocation5], 0
    // Predicated region
    $region2: #{critic_forward.1} parent=1 // pred_check
      _
    $region3: #{critic_forward.1} parent=1 // pred_check_branch
      %27 = sbr.rel (0) target = $region5
    $region4: #{critic_forward.1} parent=1 // pred_region
      _
    $region5: #{critic_forward.1} parent=1 // pred_fallthru
      _
    // Predicated region
    $region6: #{critic_forward.1} parent=1 // pred_check
      _
    $region7: #{critic_forward.1} parent=1 // pred_check_branch
      %29 = sbr.rel (0) target = $region9
    $region8: #{critic_forward.1} parent=1 // pred_region
      _
    $region9: #{critic_forward.1} parent=1 // pred_fallthru
      _
    // Predicated region
    $region10: #{critic_forward.1} parent=1 // pred_check
      _
    $region11: #{critic_forward.1} parent=1 // pred_check_branch
      %31 = sbr.rel (0) target = $region13
    $region12: #{critic_forward.1} parent=1 // pred_region
      %s33 = ssub.s32 64, 64
      %34 = vsyncadd [#allocation4], %s33
      %s36 = sshll.u32 [#allocation3], 4
      %s37 = int_to_ptr.vmem [resolvable:$true] %s36
      %39 = dma.hbm_to_vmem [thread:$0]  %s2, 64, %s37, [#allocation4]
    $region13: #{critic_forward.1} parent=1 // pred_fallthru
      _
    // Predicated region
    $region14: #{critic_forward.1} parent=1 // pred_check
      _
    $region15: #{critic_forward.1} parent=1 // pred_check_branch
      %41 = sbr.rel (0) target = $region17
    $region16: #{critic_forward.1} parent=1 // pred_region
      %s43 = ssub.s32 8192, 8192
      %44 = vsyncadd [#allocation7], %s43
      %s45 = sshll.u32 [#allocation6], 4
      %s46 = int_to_ptr.vmem [resolvable:$true] %s45
      %51 = dma.hbm_to_vmem [thread:$0]  %s3, 8192, %s46, [#allocation7], 128, 128, 8
    $region17: #{critic_forward.1} parent=1 // pred_fallthru
      _
    // Predicated region
    $region18: #{critic_forward.1} parent=1 // pred_check
      _
    $region19: #{critic_forward.1} parent=1 // pred_check_branch
      %53 = sbr.rel (0) target = $region21
    $region20: #{critic_forward.1} parent=1 // pred_region
      %s55 = ssub.s32 32, 32
      %56 = vsyncadd [#allocation7], %s55
      %s58 = sshll.u32 [#allocation8], 4
      %s59 = int_to_ptr.vmem [resolvable:$true] %s58
      %61 = dma.hbm_to_vmem [thread:$0]  %s4, 32, %s59, [#allocation7]
    $region21: #{critic_forward.1} parent=1 // pred_fallthru
      _
    // Predicated region
    $region22: #{critic_forward.1} parent=1 // pred_check
      _
    $region23: #{critic_forward.1} parent=1 // pred_check_branch
      %63 = sbr.rel (0) target = $region25
    $region24: #{critic_forward.1} parent=1 // pred_region
      %s65 = ssub.s32 2048, 2048
      %66 = vsyncadd [#allocation10], %s65
      %s67 = sshll.u32 [#allocation9], 4
      %s68 = int_to_ptr.vmem [resolvable:$true] %s67
      %73 = dma.hbm_to_vmem [thread:$0]  %s5, 2048, %s68, [#allocation10], 64, 64, 4
    $region25: #{critic_forward.1} parent=1 // pred_fallthru
      _
    // Predicated region
    $region26: #{critic_forward.1} parent=1 // pred_check
      _
    $region27: #{critic_forward.1} parent=1 // pred_check_branch
      %75 = sbr.rel (0) target = $region29
    $region28: #{critic_forward.1} parent=1 // pred_region
      _
    $region29: #{critic_forward.1} parent=1 // pred_fallthru
      _
    // Predicated region
    $region30: #{critic_forward.1} parent=1 // pred_check
      _
    $region31: #{critic_forward.1} parent=1 // pred_check_branch
      %77 = sbr.rel (0) target = $region33
    $region32: #{critic_forward.1} parent=1 // pred_region
      _
    $region33: #{critic_forward.1} parent=1 // pred_fallthru
      _
    // Predicated region
    $region34: #{critic_forward.1} parent=1 // pred_check
      _
    $region35: #{critic_forward.1} parent=1 // pred_check_branch
      %79 = sbr.rel (0) target = $region37
    $region36: #{critic_forward.1} parent=1 // pred_region
      %s81 = ssub.s32 16, 16
      %82 = vsyncadd [#allocation10], %s81
      %s84 = sshll.u32 [#allocation11], 4
      %s85 = int_to_ptr.vmem [resolvable:$true] %s84
      %87 = dma.hbm_to_vmem [thread:$0]  %s8, 16, %s85, [#allocation10]
    $region37: #{critic_forward.1} parent=1 // pred_fallthru
      _
    // Predicated region
    $region38: #{critic_forward.1} parent=1 // pred_check
      _
    $region39: #{critic_forward.1} parent=1 // pred_check_branch
      %89 = sbr.rel (0) target = $region41
    $region40: #{critic_forward.1} parent=1 // pred_region
      _
    $region41: #{critic_forward.1} parent=1 // pred_fallthru
      _
    // Predicated region
    $region42: #{critic_forward.1} parent=1 // pred_check
      _
    $region43: #{critic_forward.1} parent=1 // pred_check_branch
      %91 = sbr.rel (0) target = $region45
    $region44: #{critic_forward.1} parent=1 // pred_region
      _
    $region45: #{critic_forward.1} parent=1 // pred_fallthru
      _
    // Predicated region
    $region46: #{critic_forward.1} parent=1 // pred_check
      _
    $region47: #{critic_forward.1} parent=1 // pred_check_branch
      %93 = sbr.rel (0) target = $region49
    $region48: #{critic_forward.1} parent=1 // pred_region
      _
    $region49: #{critic_forward.1} parent=1 // pred_fallthru
      _
    // Predicated region
    $region50: #{critic_forward.1} parent=1 // pred_check
      _
    $region51: #{critic_forward.1} parent=1 // pred_check_branch
      %95 = sbr.rel (0) target = $region53
    $region52: #{critic_forward.1} parent=1 // pred_region
      _
    $region53: #{critic_forward.1} parent=1 // pred_fallthru
      _
    // Predicated region
    $region54: #{critic_forward.1} parent=1 // pred_check
      _
    $region55: #{critic_forward.1} parent=1 // pred_check_branch
      %97 = sbr.rel (0) target = $region57
    $region56: #{critic_forward.1} parent=1 // pred_region
      _
    $region57: #{critic_forward.1} parent=1 // pred_fallthru
      _
    // Predicated region
    $region58: #{critic_forward.1} parent=1 // pred_check
      _
    $region59: #{critic_forward.1} parent=1 // pred_check_branch
      %99 = sbr.rel (0) target = $region61
    $region60: #{critic_forward.1} parent=1 // pred_region
      _
    $region61: #{critic_forward.1} parent=1 // pred_fallthru
      _
    // Predicated region
    $region62: #{critic_forward.1} parent=1 // pred_check
      _
    $region63: #{critic_forward.1} parent=1 // pred_check_branch
      %101 = sbr.rel (0) target = $region65
    $region64: #{critic_forward.1} parent=1 // pred_region
      %102 = dma.done [#allocation4], 64
    $region65: #{critic_forward.1} parent=1 // pred_fallthru
      _
    // Predicated region
    $region66: #{critic_forward.1} parent=1 // pred_check
      _
    $region67: #{critic_forward.1} parent=1 // pred_check_branch
      %104 = sbr.rel (0) target = $region69
    $region68: #{critic_forward.1} parent=1 // pred_region
      %105 = dma.done [#allocation7], 8192
    $region69: #{critic_forward.1} parent=1 // pred_fallthru
      _
    // Predicated region
    $region70: #{critic_forward.1} parent=1 // pred_check
      _
    $region71: #{critic_forward.1} parent=1 // pred_check_branch
      %107 = sbr.rel (0) target = $region73
    $region72: #{critic_forward.1} parent=1 // pred_region
      %108 = dma.done [#allocation7], 32
    $region73: #{critic_forward.1} parent=1 // pred_fallthru
      _
    // Predicated region
    $region74: #{critic_forward.1} parent=1 // pred_check
      _
    $region75: #{critic_forward.1} parent=1 // pred_check_branch
      %110 = sbr.rel (0) target = $region77
    $region76: #{critic_forward.1} parent=1 // pred_region
      %111 = dma.done [#allocation10], 2048
    $region77: #{critic_forward.1} parent=1 // pred_fallthru
      _
    // Predicated region
    $region78: #{critic_forward.1} parent=1 // pred_check
      _
    $region79: #{critic_forward.1} parent=1 // pred_check_branch
      %113 = sbr.rel (0) target = $region81
    $region80: #{critic_forward.1} parent=1 // pred_region
      %114 = dma.done [#allocation10], 16
    $region81: #{critic_forward.1} parent=1 // pred_fallthru
      _
    %v116 = vld [vmem:[%s0] sm:$0x1]
    %v117 = vld [vmem:[%s1] sm:$0xff]
    %v118 = vld [vmem:[%s1 + $0x8] sm:$0xff]
    %v119 = vld [vmem:[%s1 + $0x10] sm:$0xff]
    %v120 = vld [vmem:[%s1 + $0x18] sm:$0xff]
    %v121 = vld [vmem:[%s1 + $0x20] sm:$0xff]
    %v122 = vld [vmem:[%s1 + $0x28] sm:$0xff]
    %v123 = vld [vmem:[%s1 + $0x30] sm:$0xff]
    %v124 = vld [vmem:[%s1 + $0x38] sm:$0xff]
    %v125 = vld [vmem:[%s1 + $0x40] sm:$0xff]
    %v126 = vld [vmem:[%s1 + $0x48] sm:$0xff]
    %v127 = vld [vmem:[%s1 + $0x50] sm:$0xff]
    %v128 = vld [vmem:[%s1 + $0x58] sm:$0xff]
    %v129 = vld [vmem:[%s1 + $0x60] sm:$0xff]
    %v130 = vld [vmem:[%s1 + $0x68] sm:$0xff]
    %v131 = vld [vmem:[%s1 + $0x70] sm:$0xff]
    %v132 = vld [vmem:[%s1 + $0x78] sm:$0xff]
    %v133 = vld [vmem:[#allocation3] sm:$0xf]
    %v135 = vlaneseq
    %v136 = vshrl.u32 %v135, 7
    %v137 = vsub.s32 0, %v136
    %v138 = vrot.slane %v133, %v137
    %v139 = vlaneseq
    %v140 = vshrl.u32 %v139, 7
    %v141 = vsub.s32 1, %v140
    %v142 = vrot.slane %v133, %v141
    %v143 = vlaneseq
    %v144 = vshrl.u32 %v143, 7
    %v145 = vsub.s32 2, %v144
    %v146 = vrot.slane %v133, %v145
    %v147 = vlaneseq
    %v148 = vshrl.u32 %v147, 7
    %v149 = vsub.s32 3, %v148
    %v150 = vrot.slane %v133, %v149
    %v171 = vunpack.c.l.b16 %v117
    %v172 = vunpack.c.h.b16 %v117
    %v173 = vunpack.c.l.b16 %v118
    %v174 = vunpack.c.h.b16 %v118
    %v175 = vunpack.c.l.b16 %v119
    %v176 = vunpack.c.h.b16 %v119
    %v177 = vunpack.c.l.b16 %v120
    %v178 = vunpack.c.h.b16 %v120
    %v179 = vunpack.c.l.b16 %v121
    %v180 = vunpack.c.h.b16 %v121
    %v181 = vunpack.c.l.b16 %v122
    %v182 = vunpack.c.h.b16 %v122
    %v183 = vunpack.c.l.b16 %v123
    %v184 = vunpack.c.h.b16 %v123
    %v185 = vunpack.c.l.b16 %v124
    %v186 = vunpack.c.h.b16 %v124
    %v187 = vunpack.c.l.b16 %v125
    %v188 = vunpack.c.h.b16 %v125
    %v189 = vunpack.c.l.b16 %v126
    %v190 = vunpack.c.h.b16 %v126
    %v191 = vunpack.c.l.b16 %v127
    %v192 = vunpack.c.h.b16 %v127
    %v193 = vunpack.c.l.b16 %v128
    %v194 = vunpack.c.h.b16 %v128
    %v195 = vunpack.c.l.b16 %v129
    %v196 = vunpack.c.h.b16 %v129
    %v197 = vunpack.c.l.b16 %v130
    %v198 = vunpack.c.h.b16 %v130
    %v199 = vunpack.c.l.b16 %v131
    %v200 = vunpack.c.h.b16 %v131
    %v201 = vunpack.c.l.b16 %v132
    %v202 = vunpack.c.h.b16 %v132
    %v203 = vpack.c.b16 %v175, %v171
    %v204 = vpack.c.b16 %v176, %v172
    %v205 = vpack.c.b16 %v177, %v173
    %v206 = vpack.c.b16 %v178, %v174
    %v207 = vpack.c.b16 %v183, %v179
    %v208 = vpack.c.b16 %v184, %v180
    %v209 = vpack.c.b16 %v185, %v181
    %v210 = vpack.c.b16 %v186, %v182
    %v211 = vpack.c.b16 %v191, %v187
    %v212 = vpack.c.b16 %v192, %v188
    %v213 = vpack.c.b16 %v193, %v189
    %v214 = vpack.c.b16 %v194, %v190
    %v215 = vpack.c.b16 %v199, %v195
    %v216 = vpack.c.b16 %v200, %v196
    %v217 = vpack.c.b16 %v201, %v197
    %v218 = vpack.c.b16 %v202, %v198
    %vm235 = vcmask 523264
    %v237 = vsel %vm235, %v116, 0
    %239 = vmatprep.subr.bf16.mxu0 0
    %240 = vmatpush1.bf16.msra.mxu0 0
    %241 = vmatprep.subr.bf16.mxu0 0
    %242 = vmatpush1.bf16.msra.mxu0 0
    %243 = vmatprep.subr.bf16.mxu0 0
    %244 = vmatpush1.bf16.msra.mxu0 0
    %245 = vmatprep.subr.bf16.mxu0 0
    %246 = vmatpush1.bf16.msra.mxu0 0
    %247 = vmatprep.subr.bf16.mxu0 %v216
    %248 = vmatpush1.bf16.msra.mxu0 %v215
    %249 = vmatprep.subr.bf16.mxu0 %v212
    %250 = vmatpush1.bf16.msra.mxu0 %v211
    %251 = vmatprep.subr.bf16.mxu0 %v208
    %252 = vmatpush1.bf16.msra.mxu0 %v207
    %253 = vmatprep.subr.bf16.mxu0 %v204
    %254 = vmatpush1.bf16.msra.mxu0 %v203
    %255 = vmatprep.subr.bf16.mxu0 0
    %256 = vmatpush2.bf16.msra.mxu0 0
    %257 = vmatprep.subr.bf16.mxu0 0
    %258 = vmatpush2.bf16.msra.mxu0 0
    %259 = vmatprep.subr.bf16.mxu0 0
    %260 = vmatpush2.bf16.msra.mxu0 0
    %261 = vmatprep.subr.bf16.mxu0 0
    %262 = vmatpush2.bf16.msra.mxu0 0
    %263 = vmatprep.subr.bf16.mxu0 0
    %264 = vmatpush2.bf16.msra.mxu0 0
    %265 = vmatprep.subr.bf16.mxu0 0
    %266 = vmatpush2.bf16.msra.mxu0 0
    %267 = vmatprep.subr.bf16.mxu0 0
    %268 = vmatpush2.bf16.msra.mxu0 0
    %269 = vmatprep.subr.bf16.mxu0 0
    %270 = vmatpush2.bf16.msra.mxu0 0
    %271 = vmatprep.mubr.bf16.mxu0 0
    %272 = vmatmul.mubr.bf16.gmra.mxu0 %v237
    %v273 = vpop.f32.mrf.mxu0
    %v274 = vadd.f32 %v138, %v273
    %v275 = vpop.f32.mrf.mxu0
    %v276 = vadd.f32 %v142, %v275
    %v277 = vpop.f32.mrf.mxu0
    %v278 = vpop.f32.mrf.mxu0
    %279 = vdwg.mxu0
    %280 = vmatprep.subr.bf16.mxu0 0
    %281 = vmatpush1.bf16.msra.mxu0 0
    %282 = vmatprep.subr.bf16.mxu0 0
    %283 = vmatpush1.bf16.msra.mxu0 0
    %284 = vmatprep.subr.bf16.mxu0 0
    %285 = vmatpush1.bf16.msra.mxu0 0
    %286 = vmatprep.subr.bf16.mxu0 0
    %287 = vmatpush1.bf16.msra.mxu0 0
    %288 = vmatprep.subr.bf16.mxu0 %v218
    %289 = vmatpush1.bf16.msra.mxu0 %v217
    %290 = vmatprep.subr.bf16.mxu0 %v214
    %291 = vmatpush1.bf16.msra.mxu0 %v213
    %292 = vmatprep.subr.bf16.mxu0 %v210
    %293 = vmatpush1.bf16.msra.mxu0 %v209
    %294 = vmatprep.subr.bf16.mxu0 %v206
    %295 = vmatpush1.bf16.msra.mxu0 %v205
    %296 = vmatprep.subr.bf16.mxu0 0
    %297 = vmatpush2.bf16.msra.mxu0 0
    %298 = vmatprep.subr.bf16.mxu0 0
    %299 = vmatpush2.bf16.msra.mxu0 0
    %300 = vmatprep.subr.bf16.mxu0 0
    %301 = vmatpush2.bf16.msra.mxu0 0
    %302 = vmatprep.subr.bf16.mxu0 0
    %303 = vmatpush2.bf16.msra.mxu0 0
    %304 = vmatprep.subr.bf16.mxu0 0
    %305 = vmatpush2.bf16.msra.mxu0 0
    %306 = vmatprep.subr.bf16.mxu0 0
    %307 = vmatpush2.bf16.msra.mxu0 0
    %308 = vmatprep.subr.bf16.mxu0 0
    %309 = vmatpush2.bf16.msra.mxu0 0
    %310 = vmatprep.subr.bf16.mxu0 0
    %311 = vmatpush2.bf16.msra.mxu0 0
    %312 = vmatprep.mubr.bf16.mxu0 0
    %313 = vmatmul.mubr.bf16.gmra.mxu0 %v237
    %v314 = vpop.f32.mrf.mxu0
    %v315 = vadd.f32 %v146, %v314
    %v316 = vpop.f32.mrf.mxu0
    %v317 = vadd.f32 %v150, %v316
    %v318 = vpop.f32.mrf.mxu0
    %v319 = vpop.f32.mrf.mxu0
    %320 = vdwg.mxu0
    %v321 = vmax.f32 %v274, 0.0
    %v322 = vmax.f32 %v276, 0.0
    %v323 = vmax.f32 %v315, 0.0
    %v324 = vmax.f32 %v317, 0.0
    %v325 = vpack.c.bf16 %v321, %v321
    %v326 = vpack.c.bf16 %v322, %v322
    %v327 = vpack.c.bf16 %v323, %v323
    %v328 = vpack.c.bf16 %v324, %v324
    %v329 = vld [vmem:[#allocation6] sm:$0xff]
    %v330 = vld [vmem:[#allocation6 + $0x8] sm:$0xff]
    %v331 = vld [vmem:[#allocation6 + $0x10] sm:$0xff]
    %v332 = vld [vmem:[#allocation6 + $0x18] sm:$0xff]
    %v333 = vld [vmem:[#allocation6 + $0x20] sm:$0xff]
    %v334 = vld [vmem:[#allocation6 + $0x28] sm:$0xff]
    %v335 = vld [vmem:[#allocation6 + $0x30] sm:$0xff]
    %v336 = vld [vmem:[#allocation6 + $0x38] sm:$0xff]
    %v337 = vld [vmem:[#allocation6 + $0x40] sm:$0xff]
    %v338 = vld [vmem:[#allocation6 + $0x48] sm:$0xff]
    %v339 = vld [vmem:[#allocation6 + $0x50] sm:$0xff]
    %v340 = vld [vmem:[#allocation6 + $0x58] sm:$0xff]
    %v341 = vld [vmem:[#allocation6 + $0x60] sm:$0xff]
    %v342 = vld [vmem:[#allocation6 + $0x68] sm:$0xff]
    %v343 = vld [vmem:[#allocation6 + $0x70] sm:$0xff]
    %v344 = vld [vmem:[#allocation6 + $0x78] sm:$0xff]
    %v345 = vld [vmem:[#allocation6 + $0x80] sm:$0xff]
    %v346 = vld [vmem:[#allocation6 + $0x88] sm:$0xff]
    %v347 = vld [vmem:[#allocation6 + $0x90] sm:$0xff]
    %v348 = vld [vmem:[#allocation6 + $0x98] sm:$0xff]
    %v349 = vld [vmem:[#allocation6 + $0xa0] sm:$0xff]
    %v350 = vld [vmem:[#allocation6 + $0xa8] sm:$0xff]
    %v351 = vld [vmem:[#allocation6 + $0xb0] sm:$0xff]
    %v352 = vld [vmem:[#allocation6 + $0xb8] sm:$0xff]
    %v353 = vld [vmem:[#allocation6 + $0xc0] sm:$0xff]
    %v354 = vld [vmem:[#allocation6 + $0xc8] sm:$0xff]
    %v355 = vld [vmem:[#allocation6 + $0xd0] sm:$0xff]
    %v356 = vld [vmem:[#allocation6 + $0xd8] sm:$0xff]
    %v357 = vld [vmem:[#allocation6 + $0xe0] sm:$0xff]
    %v358 = vld [vmem:[#allocation6 + $0xe8] sm:$0xff]
    %v359 = vld [vmem:[#allocation6 + $0xf0] sm:$0xff]
    %v360 = vld [vmem:[#allocation6 + $0xf8] sm:$0xff]
    %v361 = vld [vmem:[#allocation6 + $0x100] sm:$0xff]
    %v362 = vld [vmem:[#allocation6 + $0x108] sm:$0xff]
    %v363 = vld [vmem:[#allocation6 + $0x110] sm:$0xff]
    %v364 = vld [vmem:[#allocation6 + $0x118] sm:$0xff]
    %v365 = vld [vmem:[#allocation6 + $0x120] sm:$0xff]
    %v366 = vld [vmem:[#allocation6 + $0x128] sm:$0xff]
    %v367 = vld [vmem:[#allocation6 + $0x130] sm:$0xff]
    %v368 = vld [vmem:[#allocation6 + $0x138] sm:$0xff]
    %v369 = vld [vmem:[#allocation6 + $0x140] sm:$0xff]
    %v370 = vld [vmem:[#allocation6 + $0x148] sm:$0xff]
    %v371 = vld [vmem:[#allocation6 + $0x150] sm:$0xff]
    %v372 = vld [vmem:[#allocation6 + $0x158] sm:$0xff]
    %v373 = vld [vmem:[#allocation6 + $0x160] sm:$0xff]
    %v374 = vld [vmem:[#allocation6 + $0x168] sm:$0xff]
    %v375 = vld [vmem:[#allocation6 + $0x170] sm:$0xff]
    %v376 = vld [vmem:[#allocation6 + $0x178] sm:$0xff]
    %v377 = vld [vmem:[#allocation6 + $0x180] sm:$0xff]
    %v378 = vld [vmem:[#allocation6 + $0x188] sm:$0xff]
    %v379 = vld [vmem:[#allocation6 + $0x190] sm:$0xff]
    %v380 = vld [vmem:[#allocation6 + $0x198] sm:$0xff]
    %v381 = vld [vmem:[#allocation6 + $0x1a0] sm:$0xff]
    %v382 = vld [vmem:[#allocation6 + $0x1a8] sm:$0xff]
    %v383 = vld [vmem:[#allocation6 + $0x1b0] sm:$0xff]
    %v384 = vld [vmem:[#allocation6 + $0x1b8] sm:$0xff]
    %v385 = vld [vmem:[#allocation6 + $0x1c0] sm:$0xff]
    %v386 = vld [vmem:[#allocation6 + $0x1c8] sm:$0xff]
    %v387 = vld [vmem:[#allocation6 + $0x1d0] sm:$0xff]
    %v388 = vld [vmem:[#allocation6 + $0x1d8] sm:$0xff]
    %v389 = vld [vmem:[#allocation6 + $0x1e0] sm:$0xff]
    %v390 = vld [vmem:[#allocation6 + $0x1e8] sm:$0xff]
    %v391 = vld [vmem:[#allocation6 + $0x1f0] sm:$0xff]
    %v392 = vld [vmem:[#allocation6 + $0x1f8] sm:$0xff]
    %v393 = vld [vmem:[#allocation8] sm:$0x3]
    %v395 = vlaneseq
    %v396 = vshrl.u32 %v395, 7
    %v397 = vsub.s32 0, %v396
    %v398 = vrot.slane %v393, %v397
    %v399 = vlaneseq
    %v400 = vshrl.u32 %v399, 7
    %v401 = vsub.s32 1, %v400
    %v402 = vrot.slane %v393, %v401
    %v469 = vunpack.c.l.b16 %v329
    %v470 = vunpack.c.h.b16 %v329
    %v471 = vunpack.c.l.b16 %v330
    %v472 = vunpack.c.h.b16 %v330
    %v473 = vunpack.c.l.b16 %v331
    %v474 = vunpack.c.h.b16 %v331
    %v475 = vunpack.c.l.b16 %v332
    %v476 = vunpack.c.h.b16 %v332
    %v477 = vunpack.c.l.b16 %v333
    %v478 = vunpack.c.h.b16 %v333
    %v479 = vunpack.c.l.b16 %v334
    %v480 = vunpack.c.h.b16 %v334
    %v481 = vunpack.c.l.b16 %v335
    %v482 = vunpack.c.h.b16 %v335
    %v483 = vunpack.c.l.b16 %v336
    %v484 = vunpack.c.h.b16 %v336
    %v485 = vunpack.c.l.b16 %v337
    %v486 = vunpack.c.h.b16 %v337
    %v487 = vunpack.c.l.b16 %v338
    %v488 = vunpack.c.h.b16 %v338
    %v489 = vunpack.c.l.b16 %v339
    %v490 = vunpack.c.h.b16 %v339
    %v491 = vunpack.c.l.b16 %v340
    %v492 = vunpack.c.h.b16 %v340
    %v493 = vunpack.c.l.b16 %v341
    %v494 = vunpack.c.h.b16 %v341
    %v495 = vunpack.c.l.b16 %v342
    %v496 = vunpack.c.h.b16 %v342
    %v497 = vunpack.c.l.b16 %v343
    %v498 = vunpack.c.h.b16 %v343
    %v499 = vunpack.c.l.b16 %v344
    %v500 = vunpack.c.h.b16 %v344
    %v501 = vunpack.c.l.b16 %v345
    %v502 = vunpack.c.h.b16 %v345
    %v503 = vunpack.c.l.b16 %v346
    %v504 = vunpack.c.h.b16 %v346
    %v505 = vunpack.c.l.b16 %v347
    %v506 = vunpack.c.h.b16 %v347
    %v507 = vunpack.c.l.b16 %v348
    %v508 = vunpack.c.h.b16 %v348
    %v509 = vunpack.c.l.b16 %v349
    %v510 = vunpack.c.h.b16 %v349
    %v511 = vunpack.c.l.b16 %v350
    %v512 = vunpack.c.h.b16 %v350
    %v513 = vunpack.c.l.b16 %v351
    %v514 = vunpack.c.h.b16 %v351
    %v515 = vunpack.c.l.b16 %v352
    %v516 = vunpack.c.h.b16 %v352
    %v517 = vunpack.c.l.b16 %v353
    %v518 = vunpack.c.h.b16 %v353
    %v519 = vunpack.c.l.b16 %v354
    %v520 = vunpack.c.h.b16 %v354
    %v521 = vunpack.c.l.b16 %v355
    %v522 = vunpack.c.h.b16 %v355
    %v523 = vunpack.c.l.b16 %v356
    %v524 = vunpack.c.h.b16 %v356
    %v525 = vunpack.c.l.b16 %v357
    %v526 = vunpack.c.h.b16 %v357
    %v527 = vunpack.c.l.b16 %v358
    %v528 = vunpack.c.h.b16 %v358
    %v529 = vunpack.c.l.b16 %v359
    %v530 = vunpack.c.h.b16 %v359
    %v531 = vunpack.c.l.b16 %v360
    %v532 = vunpack.c.h.b16 %v360
    %v533 = vunpack.c.l.b16 %v361
    %v534 = vunpack.c.h.b16 %v361
    %v535 = vunpack.c.l.b16 %v362
    %v536 = vunpack.c.h.b16 %v362
    %v537 = vunpack.c.l.b16 %v363
    %v538 = vunpack.c.h.b16 %v363
    %v539 = vunpack.c.l.b16 %v364
    %v540 = vunpack.c.h.b16 %v364
    %v541 = vunpack.c.l.b16 %v365
    %v542 = vunpack.c.h.b16 %v365
    %v543 = vunpack.c.l.b16 %v366
    %v544 = vunpack.c.h.b16 %v366
    %v545 = vunpack.c.l.b16 %v367
    %v546 = vunpack.c.h.b16 %v367
    %v547 = vunpack.c.l.b16 %v368
    %v548 = vunpack.c.h.b16 %v368
    %v549 = vunpack.c.l.b16 %v369
    %v550 = vunpack.c.h.b16 %v369
    %v551 = vunpack.c.l.b16 %v370
    %v552 = vunpack.c.h.b16 %v370
    %v553 = vunpack.c.l.b16 %v371
    %v554 = vunpack.c.h.b16 %v371
    %v555 = vunpack.c.l.b16 %v372
    %v556 = vunpack.c.h.b16 %v372
    %v557 = vunpack.c.l.b16 %v373
    %v558 = vunpack.c.h.b16 %v373
    %v559 = vunpack.c.l.b16 %v374
    %v560 = vunpack.c.h.b16 %v374
    %v561 = vunpack.c.l.b16 %v375
    %v562 = vunpack.c.h.b16 %v375
    %v563 = vunpack.c.l.b16 %v376
    %v564 = vunpack.c.h.b16 %v376
    %v565 = vunpack.c.l.b16 %v377
    %v566 = vunpack.c.h.b16 %v377
    %v567 = vunpack.c.l.b16 %v378
    %v568 = vunpack.c.h.b16 %v378
    %v569 = vunpack.c.l.b16 %v379
    %v570 = vunpack.c.h.b16 %v379
    %v571 = vunpack.c.l.b16 %v380
    %v572 = vunpack.c.h.b16 %v380
    %v573 = vunpack.c.l.b16 %v381
    %v574 = vunpack.c.h.b16 %v381
    %v575 = vunpack.c.l.b16 %v382
    %v576 = vunpack.c.h.b16 %v382
    %v577 = vunpack.c.l.b16 %v383
    %v578 = vunpack.c.h.b16 %v383
    %v579 = vunpack.c.l.b16 %v384
    %v580 = vunpack.c.h.b16 %v384
    %v581 = vunpack.c.l.b16 %v385
    %v582 = vunpack.c.h.b16 %v385
    %v583 = vunpack.c.l.b16 %v386
    %v584 = vunpack.c.h.b16 %v386
    %v585 = vunpack.c.l.b16 %v387
    %v586 = vunpack.c.h.b16 %v387
    %v587 = vunpack.c.l.b16 %v388
    %v588 = vunpack.c.h.b16 %v388
    %v589 = vunpack.c.l.b16 %v389
    %v590 = vunpack.c.h.b16 %v389
    %v591 = vunpack.c.l.b16 %v390
    %v592 = vunpack.c.h.b16 %v390
    %v593 = vunpack.c.l.b16 %v391
    %v594 = vunpack.c.h.b16 %v391
    %v595 = vunpack.c.l.b16 %v392
    %v596 = vunpack.c.h.b16 %v392
    %v597 = vpack.c.b16 %v471, %v469
    %v598 = vpack.c.b16 %v472, %v470
    %v599 = vpack.c.b16 %v475, %v473
    %v600 = vpack.c.b16 %v476, %v474
    %v601 = vpack.c.b16 %v479, %v477
    %v602 = vpack.c.b16 %v480, %v478
    %v603 = vpack.c.b16 %v483, %v481
    %v604 = vpack.c.b16 %v484, %v482
    %v605 = vpack.c.b16 %v487, %v485
    %v606 = vpack.c.b16 %v488, %v486
    %v607 = vpack.c.b16 %v491, %v489
    %v608 = vpack.c.b16 %v492, %v490
    %v609 = vpack.c.b16 %v495, %v493
    %v610 = vpack.c.b16 %v496, %v494
    %v611 = vpack.c.b16 %v499, %v497
    %v612 = vpack.c.b16 %v500, %v498
    %v613 = vpack.c.b16 %v503, %v501
    %v614 = vpack.c.b16 %v504, %v502
    %v615 = vpack.c.b16 %v507, %v505
    %v616 = vpack.c.b16 %v508, %v506
    %v617 = vpack.c.b16 %v511, %v509
    %v618 = vpack.c.b16 %v512, %v510
    %v619 = vpack.c.b16 %v515, %v513
    %v620 = vpack.c.b16 %v516, %v514
    %v621 = vpack.c.b16 %v519, %v517
    %v622 = vpack.c.b16 %v520, %v518
    %v623 = vpack.c.b16 %v523, %v521
    %v624 = vpack.c.b16 %v524, %v522
    %v625 = vpack.c.b16 %v527, %v525
    %v626 = vpack.c.b16 %v528, %v526
    %v627 = vpack.c.b16 %v531, %v529
    %v628 = vpack.c.b16 %v532, %v530
    %v629 = vpack.c.b16 %v535, %v533
    %v630 = vpack.c.b16 %v536, %v534
    %v631 = vpack.c.b16 %v539, %v537
    %v632 = vpack.c.b16 %v540, %v538
    %v633 = vpack.c.b16 %v543, %v541
    %v634 = vpack.c.b16 %v544, %v542
    %v635 = vpack.c.b16 %v547, %v545
    %v636 = vpack.c.b16 %v548, %v546
    %v637 = vpack.c.b16 %v551, %v549
    %v638 = vpack.c.b16 %v552, %v550
    %v639 = vpack.c.b16 %v555, %v553
    %v640 = vpack.c.b16 %v556, %v554
    %v641 = vpack.c.b16 %v559, %v557
    %v642 = vpack.c.b16 %v560, %v558
    %v643 = vpack.c.b16 %v563, %v561
    %v644 = vpack.c.b16 %v564, %v562
    %v645 = vpack.c.b16 %v567, %v565
    %v646 = vpack.c.b16 %v568, %v566
    %v647 = vpack.c.b16 %v571, %v569
    %v648 = vpack.c.b16 %v572, %v570
    %v649 = vpack.c.b16 %v575, %v573
    %v650 = vpack.c.b16 %v576, %v574
    %v651 = vpack.c.b16 %v579, %v577
    %v652 = vpack.c.b16 %v580, %v578
    %v653 = vpack.c.b16 %v583, %v581
    %v654 = vpack.c.b16 %v584, %v582
    %v655 = vpack.c.b16 %v587, %v585
    %v656 = vpack.c.b16 %v588, %v586
    %v657 = vpack.c.b16 %v591, %v589
    %v658 = vpack.c.b16 %v592, %v590
    %v659 = vpack.c.b16 %v595, %v593
    %v660 = vpack.c.b16 %v596, %v594
    %725 = vmatprep.subr.bf16.mxu0 %v612
    %726 = vmatpush1.bf16.msra.mxu0 %v611
    %727 = vmatprep.subr.bf16.mxu0 %v610
    %728 = vmatpush1.bf16.msra.mxu0 %v609
    %729 = vmatprep.subr.bf16.mxu0 %v608
    %730 = vmatpush1.bf16.msra.mxu0 %v607
    %731 = vmatprep.subr.bf16.mxu0 %v606
    %732 = vmatpush1.bf16.msra.mxu0 %v605
    %733 = vmatprep.subr.bf16.mxu0 %v604
    %734 = vmatpush1.bf16.msra.mxu0 %v603
    %735 = vmatprep.subr.bf16.mxu0 %v602
    %736 = vmatpush1.bf16.msra.mxu0 %v601
    %737 = vmatprep.subr.bf16.mxu0 %v600
    %738 = vmatpush1.bf16.msra.mxu0 %v599
    %739 = vmatprep.subr.bf16.mxu0 %v598
    %740 = vmatpush1.bf16.msra.mxu0 %v597
    %741 = vmatprep.subr.bf16.mxu0 %v628
    %742 = vmatpush2.bf16.msra.mxu0 %v627
    %743 = vmatprep.subr.bf16.mxu0 %v626
    %744 = vmatpush2.bf16.msra.mxu0 %v625
    %745 = vmatprep.subr.bf16.mxu0 %v624
    %746 = vmatpush2.bf16.msra.mxu0 %v623
    %747 = vmatprep.subr.bf16.mxu0 %v622
    %748 = vmatpush2.bf16.msra.mxu0 %v621
    %749 = vmatprep.subr.bf16.mxu0 %v620
    %750 = vmatpush2.bf16.msra.mxu0 %v619
    %751 = vmatprep.subr.bf16.mxu0 %v618
    %752 = vmatpush2.bf16.msra.mxu0 %v617
    %753 = vmatprep.subr.bf16.mxu0 %v616
    %754 = vmatpush2.bf16.msra.mxu0 %v615
    %755 = vmatprep.subr.bf16.mxu0 %v614
    %756 = vmatpush2.bf16.msra.mxu0 %v613
    %757 = vmatprep.mubr.bf16.mxu0 %v326
    %758 = vmatmul.mubr.bf16.gmra.mxu0 %v325
    %v759 = vpop.f32.mrf.mxu0
    %v760 = vadd.f32 %v398, %v759
    %v761 = vpop.f32.mrf.mxu0
    %v762 = vadd.f32 %v402, %v761
    %v763 = vpop.f32.mrf.mxu0
    %v764 = vpop.f32.mrf.mxu0
    %765 = vdwg.mxu0
    %766 = vmatprep.subr.bf16.mxu0 %v644
    %767 = vmatpush1.bf16.msra.mxu0 %v643
    %768 = vmatprep.subr.bf16.mxu0 %v642
    %769 = vmatpush1.bf16.msra.mxu0 %v641
    %770 = vmatprep.subr.bf16.mxu0 %v640
    %771 = vmatpush1.bf16.msra.mxu0 %v639
    %772 = vmatprep.subr.bf16.mxu0 %v638
    %773 = vmatpush1.bf16.msra.mxu0 %v637
    %774 = vmatprep.subr.bf16.mxu0 %v636
    %775 = vmatpush1.bf16.msra.mxu0 %v635
    %776 = vmatprep.subr.bf16.mxu0 %v634
    %777 = vmatpush1.bf16.msra.mxu0 %v633
    %778 = vmatprep.subr.bf16.mxu0 %v632
    %779 = vmatpush1.bf16.msra.mxu0 %v631
    %780 = vmatprep.subr.bf16.mxu0 %v630
    %781 = vmatpush1.bf16.msra.mxu0 %v629
    %782 = vmatprep.subr.bf16.mxu0 %v660
    %783 = vmatpush2.bf16.msra.mxu0 %v659
    %784 = vmatprep.subr.bf16.mxu0 %v658
    %785 = vmatpush2.bf16.msra.mxu0 %v657
    %786 = vmatprep.subr.bf16.mxu0 %v656
    %787 = vmatpush2.bf16.msra.mxu0 %v655
    %788 = vmatprep.subr.bf16.mxu0 %v654
    %789 = vmatpush2.bf16.msra.mxu0 %v653
    %790 = vmatprep.subr.bf16.mxu0 %v652
    %791 = vmatpush2.bf16.msra.mxu0 %v651
    %792 = vmatprep.subr.bf16.mxu0 %v650
    %793 = vmatpush2.bf16.msra.mxu0 %v649
    %794 = vmatprep.subr.bf16.mxu0 %v648
    %795 = vmatpush2.bf16.msra.mxu0 %v647
    %796 = vmatprep.subr.bf16.mxu0 %v646
    %797 = vmatpush2.bf16.msra.mxu0 %v645
    %798 = vmatprep.mubr.bf16.mxu0 %v328
    %799 = vmatmul.mubr.bf16.gmra.mxu0 %v327
    %v800 = vpop.f32.mrf.mxu0
    %v801 = vadd.f32 %v760, %v800
    %v802 = vpop.f32.mrf.mxu0
    %v803 = vadd.f32 %v762, %v802
    %v804 = vpop.f32.mrf.mxu0
    %v805 = vpop.f32.mrf.mxu0
    %806 = vdwg.mxu0
    %v807 = vmax.f32 %v801, 0.0
    %v808 = vmax.f32 %v803, 0.0
    %v809 = vpack.c.bf16 %v807, %v807
    %v810 = vpack.c.bf16 %v808, %v808
    %v811 = vld [vmem:[#allocation9] sm:$0xf]
    %v812 = vld [vmem:[#allocation9 + $0x4] sm:$0xf]
    %v813 = vld [vmem:[#allocation9 + $0x8] sm:$0xf]
    %v814 = vld [vmem:[#allocation9 + $0xc] sm:$0xf]
    %v815 = vld [vmem:[#allocation9 + $0x10] sm:$0xf]
    %v816 = vld [vmem:[#allocation9 + $0x14] sm:$0xf]
    %v817 = vld [vmem:[#allocation9 + $0x18] sm:$0xf]
    %v818 = vld [vmem:[#allocation9 + $0x1c] sm:$0xf]
    %v819 = vld [vmem:[#allocation9 + $0x20] sm:$0xf]
    %v820 = vld [vmem:[#allocation9 + $0x24] sm:$0xf]
    %v821 = vld [vmem:[#allocation9 + $0x28] sm:$0xf]
    %v822 = vld [vmem:[#allocation9 + $0x2c] sm:$0xf]
    %v823 = vld [vmem:[#allocation9 + $0x30] sm:$0xf]
    %v824 = vld [vmem:[#allocation9 + $0x34] sm:$0xf]
    %v825 = vld [vmem:[#allocation9 + $0x38] sm:$0xf]
    %v826 = vld [vmem:[#allocation9 + $0x3c] sm:$0xf]
    %v827 = vld [vmem:[#allocation9 + $0x40] sm:$0xf]
    %v828 = vld [vmem:[#allocation9 + $0x44] sm:$0xf]
    %v829 = vld [vmem:[#allocation9 + $0x48] sm:$0xf]
    %v830 = vld [vmem:[#allocation9 + $0x4c] sm:$0xf]
    %v831 = vld [vmem:[#allocation9 + $0x50] sm:$0xf]
    %v832 = vld [vmem:[#allocation9 + $0x54] sm:$0xf]
    %v833 = vld [vmem:[#allocation9 + $0x58] sm:$0xf]
    %v834 = vld [vmem:[#allocation9 + $0x5c] sm:$0xf]
    %v835 = vld [vmem:[#allocation9 + $0x60] sm:$0xf]
    %v836 = vld [vmem:[#allocation9 + $0x64] sm:$0xf]
    %v837 = vld [vmem:[#allocation9 + $0x68] sm:$0xf]
    %v838 = vld [vmem:[#allocation9 + $0x6c] sm:$0xf]
    %v839 = vld [vmem:[#allocation9 + $0x70] sm:$0xf]
    %v840 = vld [vmem:[#allocation9 + $0x74] sm:$0xf]
    %v841 = vld [vmem:[#allocation9 + $0x78] sm:$0xf]
    %v842 = vld [vmem:[#allocation9 + $0x7c] sm:$0xf]
    %v843 = vld [vmem:[%s6] sm:$0x1]
    %v845 = vlaneseq
    %v846 = vshrl.u32 %v845, 7
    %v847 = vsub.s32 0, %v846
    %v848 = vrot.slane %v843, %v847
    %v882 = vunpack.c.l.b16 %v811
    %v883 = vunpack.c.l.b16 %v812
    %v884 = vunpack.c.l.b16 %v813
    %v885 = vunpack.c.l.b16 %v814
    %v886 = vunpack.c.l.b16 %v815
    %v887 = vunpack.c.l.b16 %v816
    %v888 = vunpack.c.l.b16 %v817
    %v889 = vunpack.c.l.b16 %v818
    %v890 = vunpack.c.l.b16 %v819
    %v891 = vunpack.c.l.b16 %v820
    %v892 = vunpack.c.l.b16 %v821
    %v893 = vunpack.c.l.b16 %v822
    %v894 = vunpack.c.l.b16 %v823
    %v895 = vunpack.c.l.b16 %v824
    %v896 = vunpack.c.l.b16 %v825
    %v897 = vunpack.c.l.b16 %v826
    %v898 = vunpack.c.l.b16 %v827
    %v899 = vunpack.c.l.b16 %v828
    %v900 = vunpack.c.l.b16 %v829
    %v901 = vunpack.c.l.b16 %v830
    %v902 = vunpack.c.l.b16 %v831
    %v903 = vunpack.c.l.b16 %v832
    %v904 = vunpack.c.l.b16 %v833
    %v905 = vunpack.c.l.b16 %v834
    %v906 = vunpack.c.l.b16 %v835
    %v907 = vunpack.c.l.b16 %v836
    %v908 = vunpack.c.l.b16 %v837
    %v909 = vunpack.c.l.b16 %v838
    %v910 = vunpack.c.l.b16 %v839
    %v911 = vunpack.c.l.b16 %v840
    %v912 = vunpack.c.l.b16 %v841
    %v913 = vunpack.c.l.b16 %v842
    %v914 = vpack.c.b16 %v883, %v882
    %v915 = vpack.c.b16 %v885, %v884
    %v916 = vpack.c.b16 %v887, %v886
    %v917 = vpack.c.b16 %v889, %v888
    %v918 = vpack.c.b16 %v891, %v890
    %v919 = vpack.c.b16 %v893, %v892
    %v920 = vpack.c.b16 %v895, %v894
    %v921 = vpack.c.b16 %v897, %v896
    %v922 = vpack.c.b16 %v899, %v898
    %v923 = vpack.c.b16 %v901, %v900
    %v924 = vpack.c.b16 %v903, %v902
    %v925 = vpack.c.b16 %v905, %v904
    %v926 = vpack.c.b16 %v907, %v906
    %v927 = vpack.c.b16 %v909, %v908
    %v928 = vpack.c.b16 %v911, %v910
    %v929 = vpack.c.b16 %v913, %v912
    %946 = vmatprep.subr.bf16.mxu0 0
    %947 = vmatpush1.bf16.msra.mxu0 %v921
    %948 = vmatprep.subr.bf16.mxu0 0
    %949 = vmatpush1.bf16.msra.mxu0 %v920
    %950 = vmatprep.subr.bf16.mxu0 0
    %951 = vmatpush1.bf16.msra.mxu0 %v919
    %952 = vmatprep.subr.bf16.mxu0 0
    %953 = vmatpush1.bf16.msra.mxu0 %v918
    %954 = vmatprep.subr.bf16.mxu0 0
    %955 = vmatpush1.bf16.msra.mxu0 %v917
    %956 = vmatprep.subr.bf16.mxu0 0
    %957 = vmatpush1.bf16.msra.mxu0 %v916
    %958 = vmatprep.subr.bf16.mxu0 0
    %959 = vmatpush1.bf16.msra.mxu0 %v915
    %960 = vmatprep.subr.bf16.mxu0 0
    %961 = vmatpush1.bf16.msra.mxu0 %v914
    %962 = vmatprep.subr.bf16.mxu0 0
    %963 = vmatpush2.bf16.msra.mxu0 %v929
    %964 = vmatprep.subr.bf16.mxu0 0
    %965 = vmatpush2.bf16.msra.mxu0 %v928
    %966 = vmatprep.subr.bf16.mxu0 0
    %967 = vmatpush2.bf16.msra.mxu0 %v927
    %968 = vmatprep.subr.bf16.mxu0 0
    %969 = vmatpush2.bf16.msra.mxu0 %v926
    %970 = vmatprep.subr.bf16.mxu0 0
    %971 = vmatpush2.bf16.msra.mxu0 %v925
    %972 = vmatprep.subr.bf16.mxu0 0
    %973 = vmatpush2.bf16.msra.mxu0 %v924
    %974 = vmatprep.subr.bf16.mxu0 0
    %975 = vmatpush2.bf16.msra.mxu0 %v923
    %976 = vmatprep.subr.bf16.mxu0 0
    %977 = vmatpush2.bf16.msra.mxu0 %v922
    %978 = vmatprep.mubr.bf16.mxu0 %v810
    %979 = vmatmul.mubr.bf16.gmra.mxu0 %v809
    %v980 = vpop.f32.mrf.mxu0
    %v981 = vadd.f32 %v848, %v980
    %v982 = vpop.f32.mrf.mxu0
    %v983 = vpop.f32.mrf.mxu0
    %v984 = vpop.f32.mrf.mxu0
    %985 = vdwg.mxu0
    %v986 = vmax.f32 %v981, 0.0
    %v987 = vpack.c.bf16 %v986, %v986
    %v988 = vld [vmem:[%s7] sm:$0xf]
    %v989 = vld [vmem:[%s7 + $0x4] sm:$0xf]
    %v990 = vld [vmem:[%s7 + $0x8] sm:$0xf]
    %v991 = vld [vmem:[%s7 + $0xc] sm:$0xf]
    %v992 = vld [vmem:[%s7 + $0x10] sm:$0xf]
    %v993 = vld [vmem:[%s7 + $0x14] sm:$0xf]
    %v994 = vld [vmem:[%s7 + $0x18] sm:$0xf]
    %v995 = vld [vmem:[%s7 + $0x1c] sm:$0xf]
    %v996 = vld [vmem:[%s7 + $0x20] sm:$0xf]
    %v997 = vld [vmem:[%s7 + $0x24] sm:$0xf]
    %v998 = vld [vmem:[%s7 + $0x28] sm:$0xf]
    %v999 = vld [vmem:[%s7 + $0x2c] sm:$0xf]
    %v1000 = vld [vmem:[%s7 + $0x30] sm:$0xf]
    %v1001 = vld [vmem:[%s7 + $0x34] sm:$0xf]
    %v1002 = vld [vmem:[%s7 + $0x38] sm:$0xf]
    %v1003 = vld [vmem:[%s7 + $0x3c] sm:$0xf]
    %v1004 = vld [vmem:[#allocation11] sm:$0x1]
    %v1006 = vlaneseq
    %v1007 = vshrl.u32 %v1006, 7
    %v1008 = vsub.s32 0, %v1007
    %v1009 = vrot.slane %v1004, %v1008
    %v1027 = vunpack.c.l.b16 %v988
    %v1028 = vunpack.c.l.b16 %v989
    %v1029 = vunpack.c.l.b16 %v990
    %v1030 = vunpack.c.l.b16 %v991
    %v1031 = vunpack.c.l.b16 %v992
    %v1032 = vunpack.c.l.b16 %v993
    %v1033 = vunpack.c.l.b16 %v994
    %v1034 = vunpack.c.l.b16 %v995
    %v1035 = vunpack.c.l.b16 %v996
    %v1036 = vunpack.c.l.b16 %v997
    %v1037 = vunpack.c.l.b16 %v998
    %v1038 = vunpack.c.l.b16 %v999
    %v1039 = vunpack.c.l.b16 %v1000
    %v1040 = vunpack.c.l.b16 %v1001
    %v1041 = vunpack.c.l.b16 %v1002
    %v1042 = vunpack.c.l.b16 %v1003
    %v1043 = vpack.c.b16 %v1028, %v1027
    %v1044 = vpack.c.b16 %v1030, %v1029
    %v1045 = vpack.c.b16 %v1032, %v1031
    %v1046 = vpack.c.b16 %v1034, %v1033
    %v1047 = vpack.c.b16 %v1036, %v1035
    %v1048 = vpack.c.b16 %v1038, %v1037
    %v1049 = vpack.c.b16 %v1040, %v1039
    %v1050 = vpack.c.b16 %v1042, %v1041
    %1059 = vmatprep.subr.bf16.mxu0 0
    %1060 = vmatpush1.bf16.msra.mxu0 %v1050
    %1061 = vmatprep.subr.bf16.mxu0 0
    %1062 = vmatpush1.bf16.msra.mxu0 %v1049
    %1063 = vmatprep.subr.bf16.mxu0 0
    %1064 = vmatpush1.bf16.msra.mxu0 %v1048
    %1065 = vmatprep.subr.bf16.mxu0 0
    %1066 = vmatpush1.bf16.msra.mxu0 %v1047
    %1067 = vmatprep.subr.bf16.mxu0 0
    %1068 = vmatpush1.bf16.msra.mxu0 %v1046
    %1069 = vmatprep.subr.bf16.mxu0 0
    %1070 = vmatpush1.bf16.msra.mxu0 %v1045
    %1071 = vmatprep.subr.bf16.mxu0 0
    %1072 = vmatpush1.bf16.msra.mxu0 %v1044
    %1073 = vmatprep.subr.bf16.mxu0 0
    %1074 = vmatpush1.bf16.msra.mxu0 %v1043
    %1075 = vmatprep.subr.bf16.mxu0 0
    %1076 = vmatpush2.bf16.msra.mxu0 0
    %1077 = vmatprep.subr.bf16.mxu0 0
    %1078 = vmatpush2.bf16.msra.mxu0 0
    %1079 = vmatprep.subr.bf16.mxu0 0
    %1080 = vmatpush2.bf16.msra.mxu0 0
    %1081 = vmatprep.subr.bf16.mxu0 0
    %1082 = vmatpush2.bf16.msra.mxu0 0
    %1083 = vmatprep.subr.bf16.mxu0 0
    %1084 = vmatpush2.bf16.msra.mxu0 0
    %1085 = vmatprep.subr.bf16.mxu0 0
    %1086 = vmatpush2.bf16.msra.mxu0 0
    %1087 = vmatprep.subr.bf16.mxu0 0
    %1088 = vmatpush2.bf16.msra.mxu0 0
    %1089 = vmatprep.subr.bf16.mxu0 0
    %1090 = vmatpush2.bf16.msra.mxu0 0
    %1091 = vmatprep.mubr.bf16.mxu0 0
    %1092 = vmatmul.mubr.bf16.gmra.mxu0 %v987
    %v1093 = vpop.f32.mrf.mxu0
    %v1094 = vadd.f32 %v1009, %v1093
    %v1095 = vpop.f32.mrf.mxu0
    %v1096 = vpop.f32.mrf.mxu0
    %v1097 = vpop.f32.mrf.mxu0
    %1098 = vdwg.mxu0
    %v1099 = vmax.f32 %v1094, 0.0
    %v1100 = vpack.c.bf16 %v1099, %v1099
    %v1101 = vld [vmem:[%s9] sm:$0xf]
    %v1102 = vld [vmem:[%s9 + $0x4] sm:$0xf]
    %v1103 = vld [vmem:[%s9 + $0x8] sm:$0xf]
    %v1104 = vld [vmem:[%s9 + $0xc] sm:$0xf]
    %v1105 = vld [vmem:[%s9 + $0x10] sm:$0xf]
    %v1106 = vld [vmem:[%s9 + $0x14] sm:$0xf]
    %v1107 = vld [vmem:[%s9 + $0x18] sm:$0xf]
    %v1108 = vld [vmem:[%s9 + $0x1c] sm:$0xf]
    %v1109 = vld [vmem:[%s9 + $0x20] sm:$0xf]
    %v1110 = vld [vmem:[%s9 + $0x24] sm:$0xf]
    %v1111 = vld [vmem:[%s9 + $0x28] sm:$0xf]
    %v1112 = vld [vmem:[%s9 + $0x2c] sm:$0xf]
    %v1113 = vld [vmem:[%s9 + $0x30] sm:$0xf]
    %v1114 = vld [vmem:[%s9 + $0x34] sm:$0xf]
    %v1115 = vld [vmem:[%s9 + $0x38] sm:$0xf]
    %v1116 = vld [vmem:[%s9 + $0x3c] sm:$0xf]
    %v1117 = vld [vmem:[%s10] sm:$0x1]
    %v1119 = vlaneseq
    %v1120 = vshrl.u32 %v1119, 7
    %v1121 = vsub.s32 0, %v1120
    %v1122 = vrot.slane %v1117, %v1121
    %v1140 = vunpack.c.l.b16 %v1101
    %v1141 = vunpack.c.l.b16 %v1102
    %v1142 = vunpack.c.l.b16 %v1103
    %v1143 = vunpack.c.l.b16 %v1104
    %v1144 = vunpack.c.l.b16 %v1105
    %v1145 = vunpack.c.l.b16 %v1106
    %v1146 = vunpack.c.l.b16 %v1107
    %v1147 = vunpack.c.l.b16 %v1108
    %v1148 = vunpack.c.l.b16 %v1109
    %v1149 = vunpack.c.l.b16 %v1110
    %v1150 = vunpack.c.l.b16 %v1111
    %v1151 = vunpack.c.l.b16 %v1112
    %v1152 = vunpack.c.l.b16 %v1113
    %v1153 = vunpack.c.l.b16 %v1114
    %v1154 = vunpack.c.l.b16 %v1115
    %v1155 = vunpack.c.l.b16 %v1116
    %v1156 = vpack.c.b16 %v1141, %v1140
    %v1157 = vpack.c.b16 %v1143, %v1142
    %v1158 = vpack.c.b16 %v1145, %v1144
    %v1159 = vpack.c.b16 %v1147, %v1146
    %v1160 = vpack.c.b16 %v1149, %v1148
    %v1161 = vpack.c.b16 %v1151, %v1150
    %v1162 = vpack.c.b16 %v1153, %v1152
    %v1163 = vpack.c.b16 %v1155, %v1154
    %1172 = vmatprep.subr.bf16.mxu0 0
    %1173 = vmatpush1.bf16.msra.mxu0 %v1163
    %1174 = vmatprep.subr.bf16.mxu0 0
    %1175 = vmatpush1.bf16.msra.mxu0 %v1162
    %1176 = vmatprep.subr.bf16.mxu0 0
    %1177 = vmatpush1.bf16.msra.mxu0 %v1161
    %1178 = vmatprep.subr.bf16.mxu0 0
    %1179 = vmatpush1.bf16.msra.mxu0 %v1160
    %1180 = vmatprep.subr.bf16.mxu0 0
    %1181 = vmatpush1.bf16.msra.mxu0 %v1159
    %1182 = vmatprep.subr.bf16.mxu0 0
    %1183 = vmatpush1.bf16.msra.mxu0 %v1158
    %1184 = vmatprep.subr.bf16.mxu0 0
    %1185 = vmatpush1.bf16.msra.mxu0 %v1157
    %1186 = vmatprep.subr.bf16.mxu0 0
    %1187 = vmatpush1.bf16.msra.mxu0 %v1156
    %1188 = vmatprep.subr.bf16.mxu0 0
    %1189 = vmatpush2.bf16.msra.mxu0 0
    %1190 = vmatprep.subr.bf16.mxu0 0
    %1191 = vmatpush2.bf16.msra.mxu0 0
    %1192 = vmatprep.subr.bf16.mxu0 0
    %1193 = vmatpush2.bf16.msra.mxu0 0
    %1194 = vmatprep.subr.bf16.mxu0 0
    %1195 = vmatpush2.bf16.msra.mxu0 0
    %1196 = vmatprep.subr.bf16.mxu0 0
    %1197 = vmatpush2.bf16.msra.mxu0 0
    %1198 = vmatprep.subr.bf16.mxu0 0
    %1199 = vmatpush2.bf16.msra.mxu0 0
    %1200 = vmatprep.subr.bf16.mxu0 0
    %1201 = vmatpush2.bf16.msra.mxu0 0
    %1202 = vmatprep.subr.bf16.mxu0 0
    %1203 = vmatpush2.bf16.msra.mxu0 0
    %1204 = vmatprep.mubr.bf16.mxu0 0
    %1205 = vmatmul.mubr.bf16.gmra.mxu0 %v1100
    %v1206 = vpop.f32.mrf.mxu0
    %v1207 = vadd.f32 %v1122, %v1206
    %v1208 = vpop.f32.mrf.mxu0
    %v1209 = vpop.f32.mrf.mxu0
    %v1210 = vpop.f32.mrf.mxu0
    %1211 = vdwg.mxu0
    %v1212 = vmax.f32 %v1207, 0.0
    %v1213 = vpack.c.bf16 %v1212, %v1212
    %v1214 = vld [vmem:[%s11] sm:$0xf]
    %v1215 = vld [vmem:[%s11 + $0x4] sm:$0xf]
    %v1216 = vld [vmem:[%s11 + $0x8] sm:$0xf]
    %v1217 = vld [vmem:[%s11 + $0xc] sm:$0xf]
    %v1218 = vld [vmem:[%s11 + $0x10] sm:$0xf]
    %v1219 = vld [vmem:[%s11 + $0x14] sm:$0xf]
    %v1220 = vld [vmem:[%s11 + $0x18] sm:$0xf]
    %v1221 = vld [vmem:[%s11 + $0x1c] sm:$0xf]
    %v1222 = vld [vmem:[%s12] sm:$0x1]
    %v1224 = vlaneseq
    %v1225 = vshrl.u32 %v1224, 7
    %v1226 = vsub.s32 0, %v1225
    %v1227 = vrot.slane %v1222, %v1226
    %v1237 = vunpack.c.l.b16 %v1214
    %v1238 = vunpack.c.l.b16 %v1215
    %v1239 = vunpack.c.l.b16 %v1216
    %v1240 = vunpack.c.l.b16 %v1217
    %v1241 = vunpack.c.l.b16 %v1218
    %v1242 = vunpack.c.l.b16 %v1219
    %v1243 = vunpack.c.l.b16 %v1220
    %v1244 = vunpack.c.l.b16 %v1221
    %v1245 = vpack.c.b16 %v1238, %v1237
    %v1246 = vpack.c.b16 %v1240, %v1239
    %v1247 = vpack.c.b16 %v1242, %v1241
    %v1248 = vpack.c.b16 %v1244, %v1243
    %v1254 = vsel %vm235, %v1213, 0
    %1256 = vmatprep.subr.bf16.mxu0 0
    %1257 = vmatpush1.bf16.msra.mxu0 0
    %1258 = vmatprep.subr.bf16.mxu0 0
    %1259 = vmatpush1.bf16.msra.mxu0 0
    %1260 = vmatprep.subr.bf16.mxu0 0
    %1261 = vmatpush1.bf16.msra.mxu0 0
    %1262 = vmatprep.subr.bf16.mxu0 0
    %1263 = vmatpush1.bf16.msra.mxu0 0
    %1264 = vmatprep.subr.bf16.mxu0 0
    %1265 = vmatpush1.bf16.msra.mxu0 %v1248
    %1266 = vmatprep.subr.bf16.mxu0 0
    %1267 = vmatpush1.bf16.msra.mxu0 %v1247
    %1268 = vmatprep.subr.bf16.mxu0 0
    %1269 = vmatpush1.bf16.msra.mxu0 %v1246
    %1270 = vmatprep.subr.bf16.mxu0 0
    %1271 = vmatpush1.bf16.msra.mxu0 %v1245
    %1272 = vmatprep.subr.bf16.mxu0 0
    %1273 = vmatpush2.bf16.msra.mxu0 0
    %1274 = vmatprep.subr.bf16.mxu0 0
    %1275 = vmatpush2.bf16.msra.mxu0 0
    %1276 = vmatprep.subr.bf16.mxu0 0
    %1277 = vmatpush2.bf16.msra.mxu0 0
    %1278 = vmatprep.subr.bf16.mxu0 0
    %1279 = vmatpush2.bf16.msra.mxu0 0
    %1280 = vmatprep.subr.bf16.mxu0 0
    %1281 = vmatpush2.bf16.msra.mxu0 0
    %1282 = vmatprep.subr.bf16.mxu0 0
    %1283 = vmatpush2.bf16.msra.mxu0 0
    %1284 = vmatprep.subr.bf16.mxu0 0
    %1285 = vmatpush2.bf16.msra.mxu0 0
    %1286 = vmatprep.subr.bf16.mxu0 0
    %1287 = vmatpush2.bf16.msra.mxu0 0
    %1288 = vmatprep.mubr.bf16.mxu0 0
    %1289 = vmatmul.mubr.bf16.gmra.mxu0 %v1254
    %v1290 = vpop.f32.mrf.mxu0
    %v1291 = vadd.f32 %v1227, %v1290
    %v1292 = vpop.f32.mrf.mxu0
    %v1293 = vpop.f32.mrf.mxu0
    %v1294 = vpop.f32.mrf.mxu0
    %1295 = vdwg.mxu0
    %v1296 = vmax.f32 %v1291, 0.0
    %v1297 = vpack.c.bf16 %v1296, %v1296
    %v1298 = vld [vmem:[%s13] sm:$0x1]
    %v1299 = vld [vmem:[#allocation2] sm:$0x1]
    %1301 = vset.pattern.permute.xlu0 0
    %1302 = vperm.xlu0 %1301, %v1299
    %v1303 = vpop.permute.xlu0 %1302
    %v1305 = vlaneseq
    %v1306 = vshrl.u32 %v1305, 7
    %v1307 = vsub.s32 0, %v1306
    %v1308 = vrot.slane %v1303, %v1307
    %vm1309 = vcmask 130048
    %v1311 = vsel %vm1309, %v1298, 0
    %v1314 = vsel %vm1309, %v1297, 0
    %1316 = vmatprep.subr.bf16.mxu0 0
    %1317 = vmatpush1.bf16.xpose.msra.mxu0 0
    %1318 = vmatprep.subr.bf16.mxu0 0
    %1319 = vmatpush1.bf16.xpose.msra.mxu0 0
    %1320 = vmatprep.subr.bf16.mxu0 0
    %1321 = vmatpush1.bf16.xpose.msra.mxu0 0
    %1322 = vmatprep.subr.bf16.mxu0 0
    %1323 = vmatpush1.bf16.xpose.msra.mxu0 0
    %1324 = vmatprep.subr.bf16.mxu0 0
    %1325 = vmatpush1.bf16.xpose.msra.mxu0 0
    %1326 = vmatprep.subr.bf16.mxu0 0
    %1327 = vmatpush1.bf16.xpose.msra.mxu0 0
    %1328 = vmatprep.subr.bf16.mxu0 0
    %1329 = vmatpush1.bf16.xpose.msra.mxu0 0
    %1330 = vmatprep.subr.bf16.mxu0 0
    %1331 = vmatpush1.bf16.xpose.msra.mxu0 %v1314
    %1332 = vmatprep.subr.bf16.mxu0 0
    %1333 = vmatpush2.bf16.xpose.msra.mxu0 0
    %1334 = vmatprep.subr.bf16.mxu0 0
    %1335 = vmatpush2.bf16.xpose.msra.mxu0 0
    %1336 = vmatprep.subr.bf16.mxu0 0
    %1337 = vmatpush2.bf16.xpose.msra.mxu0 0
    %1338 = vmatprep.subr.bf16.mxu0 0
    %1339 = vmatpush2.bf16.xpose.msra.mxu0 0
    %1340 = vmatprep.subr.bf16.mxu0 0
    %1341 = vmatpush2.bf16.xpose.msra.mxu0 0
    %1342 = vmatprep.subr.bf16.mxu0 0
    %1343 = vmatpush2.bf16.xpose.msra.mxu0 0
    %1344 = vmatprep.subr.bf16.mxu0 0
    %1345 = vmatpush2.bf16.xpose.msra.mxu0 0
    %1346 = vmatprep.subr.bf16.mxu0 0
    %1347 = vmatpush2.bf16.xpose.msra.mxu0 0
    %1348 = vmatprep.mubr.bf16.mxu0 0
    %1349 = vmatmul.mubr.bf16.gmra.mxu0 %v1311
    %v1350 = vpop.f32.mrf.mxu0
    %v1351 = vadd.f32 %v1308, %v1350
    %v1352 = vpop.f32.mrf.mxu0
    %v1353 = vpop.f32.mrf.mxu0
    %v1354 = vpop.f32.mrf.mxu0
    %1355 = vdwg.mxu0
    %vm1356 = vcmask 8192
    %1357 = vst.msk [vmem:[#allocation12] sm:$0x1] %vm1356, %v1351
    // Predicated region
    $region82: #{critic_forward.1} parent=1 // pred_check
      _
    $region83: #{critic_forward.1} parent=1 // pred_check_branch
      %1359 = sbr.rel (0) target = $region85
    $region84: #{critic_forward.1} parent=1 // pred_region
      %s1361 = ssub.s32 16, 16
      %1362 = vsyncadd [#allocation5], %s1361
      %s1364 = sshll.u32 [#allocation12], 4
      %s1365 = int_to_ptr.vmem [resolvable:$true] %s1364
      %1367 = dma.vmem_to_hbm [thread:$0]  %s1365, 16, %s15, [#allocation5]
    $region85: #{critic_forward.1} parent=1 // pred_fallthru
      _
    // Predicated region
    $region86: #{critic_forward.1} parent=1 // pred_check
      _
    $region87: #{critic_forward.1} parent=1 // pred_check_branch
      %1369 = sbr.rel (0) target = $region89
    $region88: #{critic_forward.1} parent=1 // pred_region
      %1370 = dma.done [#allocation5], 16
    $region89: #{critic_forward.1} parent=1 // pred_fallthru
      _
    %1371 = vsyncpa [#allocation4], 1
    %1372 = vsyncpa [#allocation7], 1
    %1373 = vsyncpa [#allocation10], 1
    %1374 = vsyncpa [#allocation5], 1

</llo_original>
